<compile_context>
chip_gen: v7x
topology: tpu7x:2x2x1
jax: 0.10.0
libtpu: 0.0.40
codegen_flags: <defaults>
</compile_context>

<pallas_src>
import functools

import jax
import jax.numpy as jnp
from jax import lax
from jax.experimental import pallas as pl
from jax.experimental.pallas import tpu as pltpu


def mlp_kernel(x_ref, w1_ref, s_ref, o_ref, acc_ref, *, d_total):
    # x_ref : (TB, TD)  VMEM  activation tile
    # w1_ref: (1,  TD)  VMEM  fc1 weight slice (broadcasts over batch rows)
    # s_ref : (3,)      SMEM  packed scalars [b1, w2, b2] (f32)
    # o_ref : (TB, 1)   VMEM  output block (resident across the feature axis)
    # acc_ref:(TB, 1)   VMEM  f32 partial-dot accumulator (scratch)
    k = pl.program_id(1)
    td = x_ref.shape[-1]

    @pl.when(k == 0)
    def _init():
        acc_ref[...] = jnp.zeros_like(acc_ref)

    x = x_ref[...].astype(jnp.float32)       # upcast in-register (bf16 input ok)
    w1 = w1_ref[...].astype(jnp.float32)
    prod = x * w1                            # VPU; (TB, TD)

    if d_total % td != 0:
        # Ragged feature dim: the last k-block's tail lanes hold stale VMEM
        # garbage -- zero them before the lane reduction (hidden under DMA).
        lane = lax.broadcasted_iota(jnp.int32, prod.shape, dimension=1)
        prod = jnp.where(k * td + lane < d_total, prod, 0.0)

    acc_ref[...] += jnp.sum(prod, axis=-1, keepdims=True)   # XLU lane reduce

    @pl.when(k == pl.num_programs(1) - 1)
    def _finish():
        b1 = s_ref[0]
        w2 = s_ref[1]
        b2 = s_ref[2]
        h = jnp.maximum(acc_ref[...] + b1, 0.0)              # fc1 bias + ReLU
        z = h * w2 + b2                                      # fc2 (hidden dim == 1)
        y = pl.reciprocal(1.0 + jnp.exp(-z), approx=True)    # sigmoid: EUP exp + vrcp
        o_ref[...] = y.astype(o_ref.dtype)


def _pick_tiles(batch, feat, itemsize, budget):
    """Choose (tb, td) so one x block is <= `budget` bytes.

    Sized purely by bytes (no row cap).  Block dims are either multiples of
    (8, 128) or the full array extent, so every choice is layout-legal; ragged
    shapes are handled with cdiv grids + masking, never a whole-array block.
    """
    if batch * feat * itemsize <= budget:
        return batch, feat                       # whole array in one block
    row_bytes = feat * itemsize
    max_rows = budget // row_bytes
    if max_rows >= 128:
        tb = min(batch, (max_rows // 128) * 128)
        return tb, feat                          # tile the batch axis only
    # Very wide rows: tile the reduction (feature) axis too.
    tb = batch if batch < 128 else 128
    td = max(128, ((budget // (tb * itemsize)) // 128) * 128)
    return tb, td


def _mlp_pallas(x, w1_row, scalars, *, budget_bytes):
    B, D = x.shape
    tb, td = _pick_tiles(B, D, jnp.dtype(x.dtype).itemsize, budget_bytes)
    grid = (pl.cdiv(B, tb), pl.cdiv(D, td))

    return pl.pallas_call(
        functools.partial(mlp_kernel, d_total=D),
        out_shape=jax.ShapeDtypeStruct((B, 1), x.dtype),
        grid=grid,
        in_specs=[
            pl.BlockSpec((tb, td), lambda i, k: (i, k)),        # x tile
            pl.BlockSpec((1, td), lambda i, k: (0, k)),         # w1 slice
            pl.BlockSpec(memory_space=pltpu.MemorySpace.SMEM),  # [b1, w2, b2]
        ],
        out_specs=pl.BlockSpec((tb, 1), lambda i, k: (i, 0)),
        scratch_shapes=[pltpu.VMEM((tb, 1), jnp.float32)],
        compiler_params=pltpu.CompilerParams(
            # Batch axis is embarrassingly parallel (v7x megacore sharding);
            # feature axis carries the accumulator -> arbitrary.
            dimension_semantics=("parallel", "arbitrary"),
            # 8 MiB tiles double-buffered = 16 MiB; 32 MiB scoped VMEM leaves
            # headroom and is safe on every generation (v7x: 64 MiB physical,
            # v5e scoped default is only 16 MiB so the explicit limit matters).
            vmem_limit_bytes=32 * 1024 * 1024,
        ),
    )(x, w1_row, scalars)


def mlp_2l_1n(x, w1, b1, w2, b2, *, budget_bytes=8 * 1024 * 1024):
    """x: (B, D); w1: fc1.weight (1, D); b1: fc1.bias (1,);
    w2: fc2.weight (1, 1); b2: fc2.bias (1,).  Returns (B, 1) in x.dtype.

    Feed x in bf16 from its producer to halve the dominant HBM traffic; the
    kernel upcasts to f32 internally (do NOT cast in this wrapper -- that is a
    separate full HBM pass and nets zero).
    """
    B, D = x.shape
    w1_row = jnp.asarray(w1).reshape(1, D).astype(x.dtype)
    scalars = jnp.concatenate([
        jnp.ravel(jnp.asarray(b1)).astype(jnp.float32),
        jnp.ravel(jnp.asarray(w2)).astype(jnp.float32),
        jnp.ravel(jnp.asarray(b2)).astype(jnp.float32),
    ])                                                       # (3,) -> SMEM
    return _mlp_pallas(x, w1_row, scalars, budget_bytes=budget_bytes)


if __name__ == "__main__":
    key = jax.random.PRNGKey(0)
    k_x, k_w1, k_b1, k_w2, k_b2, k_x2, k_w1b = jax.random.split(key, 7)

    def reference(x, w1, b1, w2, b2):
        pre = x.astype(jnp.float32) @ w1.astype(jnp.float32).T + b1[0]
        return jax.nn.sigmoid(jnp.maximum(pre, 0.0) * w2[0, 0] + b2[0])

    # --- small demo at module-native shapes (batch=8, input_dim=32) ---------
    B, D = 8, 32
    x = jax.random.normal(k_x, (B, D), dtype=jnp.float32)
    bound1 = 1.0 / (D ** 0.5)
    w1 = jax.random.uniform(k_w1, (1, D), minval=-bound1, maxval=bound1,
                            dtype=jnp.float32)                 # fc1.weight
    b1 = jax.random.uniform(k_b1, (1,), minval=-bound1, maxval=bound1,
                            dtype=jnp.float32)                 # fc1.bias
    w2 = jax.random.uniform(k_w2, (1, 1), minval=-1.0, maxval=1.0,
                            dtype=jnp.float32)                 # fc2.weight
    b2 = jax.random.uniform(k_b2, (1,), minval=-1.0, maxval=1.0,
                            dtype=jnp.float32)                 # fc2.bias

    out = jax.block_until_ready(mlp_2l_1n(x, w1, b1, w2, b2))
    ref = reference(x, w1, b1, w2, b2)
    assert out.shape == (B, 1)
    assert jnp.allclose(out, ref, atol=1e-3, rtol=1e-3), "small-case mismatch"

    # --- ragged shapes + tiny byte budget: exercises the 2-D grid, partial ---
    # --- edge blocks on both axes, and the in-kernel lane masking ------------
    B2, D2 = 300, 200
    x2 = jax.random.normal(k_x2, (B2, D2), dtype=jnp.float32)
    bound1b = 1.0 / (D2 ** 0.5)
    w1b = jax.random.uniform(k_w1b, (1, D2), minval=-bound1b, maxval=bound1b,
                             dtype=jnp.float32)
    out2 = jax.block_until_ready(
        mlp_2l_1n(x2, w1b, b1, w2, b2, budget_bytes=64 * 1024))
    ref2 = reference(x2, w1b, b1, w2, b2)
    assert out2.shape == (B2, 1)
    assert jnp.allclose(out2, ref2, atol=1e-3, rtol=1e-3), "tiled-case mismatch"

    # --- bf16 activations (halved HBM traffic; kernel upcasts to f32) --------
    x3 = x.astype(jnp.bfloat16)
    out3 = jax.block_until_ready(mlp_2l_1n(x3, w1, b1, w2, b2))
    ref3 = reference(x3.astype(jnp.float32),
                     w1.astype(jnp.bfloat16).astype(jnp.float32), b1, w2, b2)
    assert out3.shape == (B, 1)
    assert jnp.allclose(out3.astype(jnp.float32), ref3,
                        atol=1e-2, rtol=1e-2), "bf16-case mismatch"

    print("KERNEL_OK")
</pallas_src>

<mosaic_0001>
module attributes {stable_mosaic.version = 11 : i64} {
  func.func @mlp_kernel(%arg0: i32, %arg1: i32, %arg2: memref<8x32xf32, #tpu.memory_space<vmem>>, %arg3: memref<1x32xf32, #tpu.memory_space<vmem>>, %arg4: memref<3xf32, #tpu.memory_space<smem>>, %arg5: memref<8x1xf32, #tpu.memory_space<vmem>>, %arg6: memref<8x1xf32, #tpu.memory_space<vmem>>) attributes {dimension_semantics = [#tpu.dimension_semantics<parallel>, #tpu.dimension_semantics<arbitrary>], iteration_bounds = array<i64: 1, 1>, scalar_prefetch = 0 : i64, scratch_operands = 1 : i64, tpu.core_type = #tpu.core_type<tc>, window_params = [{transform_indices = @transform_0, window_bounds = array<i64: 8, 32>}, {transform_indices = @transform_1, window_bounds = array<i64: 1, 32>}, {transform_indices = @transform_2, window_bounds = array<i64: 3>}, {transform_indices = @transform_3, window_bounds = array<i64: 8, 1>}]} {
    %c0_i32 = arith.constant 0 : i32
    %0 = arith.cmpi eq, %arg1, %c0_i32 : i32
    %1 = arith.extui %0 : i1 to i32
    %c0_i32_0 = arith.constant 0 : i32
    %2 = arith.cmpi ne, %1, %c0_i32_0 : i32
    scf.if %2 {
      %cst_10 = arith.constant 0.000000e+00 : f32
      %15 = vector.broadcast %cst_10 : f32 to vector<8x1xf32>
      %c0_11 = arith.constant 0 : index
      %c0_12 = arith.constant 0 : index
      %16 = vector.load %arg6[%c0_11, %c0_12] : memref<8x1xf32, #tpu.memory_space<vmem>>, vector<8x1xf32>
      tpu.vector_store %arg6[%c0_11, %c0_12], %15 {strides = array<i32>} : memref<8x1xf32, #tpu.memory_space<vmem>>, vector<8x1xf32>,
    } else {
    }
    %c0 = arith.constant 0 : index
    %c0_1 = arith.constant 0 : index
    %3 = vector.load %arg2[%c0, %c0_1] : memref<8x32xf32, #tpu.memory_space<vmem>>, vector<8x32xf32>
    %c0_2 = arith.constant 0 : index
    %c0_3 = arith.constant 0 : index
    %4 = vector.load %arg3[%c0_2, %c0_3] : memref<1x32xf32, #tpu.memory_space<vmem>>, vector<1x32xf32>
    %5 = vector.broadcast %4 : vector<1x32xf32> to vector<8x32xf32>
    %6 = arith.mulf %3, %5 : vector<8x32xf32>
    %c0_4 = arith.constant 0 : index
    %c0_5 = arith.constant 0 : index
    %7 = vector.load %arg6[%c0_4, %c0_5] : memref<8x1xf32, #tpu.memory_space<vmem>>, vector<8x1xf32>
    %cst = arith.constant dense<0.000000e+00> : vector<8xf32>
    %8 = vector.multi_reduction <add>, %6, %cst [1] : vector<8x32xf32> to vector<8xf32>
    %9 = vector.shape_cast %8 : vector<8xf32> to vector<8x1xf32>
    %10 = arith.addf %7, %9 : vector<8x1xf32>
    %c0_6 = arith.constant 0 : index
    %c0_7 = arith.constant 0 : index
    %11 = vector.load %arg6[%c0_6, %c0_7] : memref<8x1xf32, #tpu.memory_space<vmem>>, vector<8x1xf32>
    tpu.vector_store %arg6[%c0_6, %c0_7], %10 {strides = array<i32>} : memref<8x1xf32, #tpu.memory_space<vmem>>, vector<8x1xf32>,
    %c0_i32_8 = arith.constant 0 : i32
    %12 = arith.cmpi eq, %arg1, %c0_i32_8 : i32
    %13 = arith.extui %12 : i1 to i32
    %c0_i32_9 = arith.constant 0 : i32
    %14 = arith.cmpi ne, %13, %c0_i32_9 : i32
    scf.if %14 {
      %c0_10 = arith.constant 0 : index
      %15 = memref.load %arg4[%c0_10] : memref<3xf32, #tpu.memory_space<smem>>
      %c1 = arith.constant 1 : index
      %16 = memref.load %arg4[%c1] : memref<3xf32, #tpu.memory_space<smem>>
      %c2 = arith.constant 2 : index
      %17 = memref.load %arg4[%c2] : memref<3xf32, #tpu.memory_space<smem>>
      %c0_11 = arith.constant 0 : index
      %c0_12 = arith.constant 0 : index
      %18 = vector.load %arg6[%c0_11, %c0_12] : memref<8x1xf32, #tpu.memory_space<vmem>>, vector<8x1xf32>
      %19 = vector.broadcast %15 : f32 to vector<8x1xf32>
      %20 = arith.addf %18, %19 : vector<8x1xf32>
      %cst_13 = arith.constant 0.000000e+00 : f32
      %21 = vector.broadcast %cst_13 : f32 to vector<8x1xf32>
      %22 = arith.maximumf %20, %21 : vector<8x1xf32>
      %23 = vector.broadcast %16 : f32 to vector<8x1xf32>
      %24 = arith.mulf %22, %23 : vector<8x1xf32>
      %25 = vector.broadcast %17 : f32 to vector<8x1xf32>
      %26 = arith.addf %24, %25 : vector<8x1xf32>
      %cst_14 = arith.constant 0.000000e+00 : f32
      %27 = vector.broadcast %cst_14 : f32 to vector<8x1xf32>
      %28 = arith.subf %27, %26 : vector<8x1xf32>
      %29 = math.exp %28 : vector<8x1xf32>
      %cst_15 = arith.constant 1.000000e+00 : f32
      %30 = vector.broadcast %cst_15 : f32 to vector<8x1xf32>
      %31 = arith.addf %30, %29 : vector<8x1xf32>
      %32 = tpu.reciprocal %31 {approx = true} : vector<8x1xf32> -> vector<8x1xf32>
      %c0_16 = arith.constant 0 : index
      %c0_17 = arith.constant 0 : index
      %33 = vector.load %arg5[%c0_16, %c0_17] : memref<8x1xf32, #tpu.memory_space<vmem>>, vector<8x1xf32>
      tpu.vector_store %arg5[%c0_16, %c0_17], %32 {strides = array<i32>} : memref<8x1xf32, #tpu.memory_space<vmem>>, vector<8x1xf32>,
    } else {
    }
    return
  }
  func.func @transform_0(%arg0: i32, %arg1: i32) -> (i32, i32) {
    %c0_i32 = arith.constant 0 : i32
    return %arg0, %arg1 : i32, i32
  }
  func.func @transform_1(%arg0: i32, %arg1: i32) -> (i32, i32) {
    %c0_i32 = arith.constant 0 : i32
    %c0_i32_0 = arith.constant 0 : i32
    return %c0_i32, %arg1 : i32, i32
  }
  func.func @transform_2(%arg0: i32, %arg1: i32) -> i32 {
    %c0_i32 = arith.constant 0 : i32
    %c0_i32_0 = arith.constant 0 : i32
    return %c0_i32 : i32
  }
  func.func @transform_3(%arg0: i32, %arg1: i32) -> (i32, i32) {
    %c0_i32 = arith.constant 0 : i32
    %c0_i32_0 = arith.constant 0 : i32
    return %arg0, %c0_i32 : i32, i32
  }
}

</mosaic_0001>

<llo_original>
// kernel: tpu_custom_call.1
$region0: #{tpu_custom_call.1}
  #allocation0 [shape = 'u32[]', space=smem, size = 0x4, offset = 0x4, fixed_abs, tag = 'smem constant byte address 0x4 - core index']
  #allocation1 [shape = 'u32[144,128]{1,0:T(1,128)}', space=vmem, size = 0x12000, scoped, tag = 'internal scratch']
  #allocation2 [shape = 'f32[8,1]{1,0:T(8,128)}', space=vmem, size = 0x1000, scoped, tag = 'scratch operand']
  %s0 = inlined_call_operand.hbm [shape: f32[8,32], index: 0, kind: input, shape index: {}]
  %s1 = inlined_call_operand.vmem [shape: f32[1,32], index: 1, kind: input, shape index: {}]
  %s2 = inlined_call_operand.vmem [shape: f32[3], index: 2, kind: input, shape index: {}]
  %s3 = inlined_call_operand.vmem [shape: f32[8,1], index: 3, kind: output, shape index: {}]
  %s4 = sld [smem:[#allocation0]]
  $region38: #{tpu_custom_call.1} parent=0
    _
  %s6 = ssub.s32 1, %s4
  %s7 = scalar_select 0, %s6, %s4
  $region1: #{tpu_custom_call.1} parent=0
    #allocation3 [shape = 'u8[4096]{0}', space=vmem, size = 0x1000, scoped, tag = 'input window, operand 0, single buffered']
    #allocation4 [shape = 's32[1]{0}', space=sflag, size = 0x4, scoped, tag = 'scoped memory for tpu_custom_call.1']
    #allocation5 [shape = 's32[1]{0}', space=sflag, size = 0x4, scoped, tag = 'scoped memory for tpu_custom_call.1']
    #allocation6 [shape = 'u8[512]{0}', space=smem, size = 0x200, scoped, tag = 'input window, operand 2, single buffered']
    %8 = vsyncpa [#allocation4], 0
    %9 = vsyncpa [#allocation5], 0
    // Predicated region
    $region2: #{tpu_custom_call.1} parent=1 // pred_check
      _
    $region3: #{tpu_custom_call.1} parent=1 // pred_check_branch
      %11 = sbr.rel (0) target = $region5
    $region4: #{tpu_custom_call.1} parent=1 // pred_region
      %s13 = ssub.s32 128, 128
      %14 = vsyncadd [#allocation4], %s13
      %s16 = sshll.u32 [#allocation3], 4
      %s17 = int_to_ptr.vmem [resolvable:$true] %s16
      %19 = dma.hbm_to_vmem [thread:$0]  %s0, 128, %s17, [#allocation4]
    $region5: #{tpu_custom_call.1} parent=1 // pred_fallthru
      _
    // Predicated region
    $region6: #{tpu_custom_call.1} parent=1 // pred_check
      _
    $region7: #{tpu_custom_call.1} parent=1 // pred_check_branch
      %21 = sbr.rel (0) target = $region9
    $region8: #{tpu_custom_call.1} parent=1 // pred_region
      _
    $region9: #{tpu_custom_call.1} parent=1 // pred_fallthru
      _
    // Predicated region
    $region10: #{tpu_custom_call.1} parent=1 // pred_check
      _
    $region11: #{tpu_custom_call.1} parent=1 // pred_check_branch
      %23 = sbr.rel (0) target = $region13
    $region12: #{tpu_custom_call.1} parent=1 // pred_region
      %s25 = ssub.s32 16, 16
      %26 = vsyncadd [#allocation5], %s25
      %s28 = sshll.u32 %s2, 4
      %s29 = int_to_ptr.vmem [resolvable:$true] %s28
      %31 = dma.vmem_to_smem %s29, 16, [#allocation6], [#allocation5]
    $region13: #{tpu_custom_call.1} parent=1 // pred_fallthru
      _
    // Predicated region
    $region14: #{tpu_custom_call.1} parent=1 // pred_check
      _
    $region15: #{tpu_custom_call.1} parent=1 // pred_check_branch
      %33 = sbr.rel (0) target = $region17
    $region16: #{tpu_custom_call.1} parent=1 // pred_region
      %34 = dma.done [#allocation4], 128
    $region17: #{tpu_custom_call.1} parent=1 // pred_fallthru
      _
    // Predicated region
    $region18: #{tpu_custom_call.1} parent=1 // pred_check
      _
    $region19: #{tpu_custom_call.1} parent=1 // pred_check_branch
      %36 = sbr.rel (0) target = $region21
    $region20: #{tpu_custom_call.1} parent=1 // pred_region
      %37 = dma.done [#allocation5], 16
    $region21: #{tpu_custom_call.1} parent=1 // pred_fallthru
      _
    %38 = sfence
    %p39 = scmp.eq.s32.totalorder 0, 0
    // Predicated region
    $region22: #{tpu_custom_call.1} parent=1 // pred_check
      %p40 = pneg %p39
    $region23: #{tpu_custom_call.1} parent=1 // pred_check_branch
      %42 = sbr.rel (%p40) target = $region25
    $region24: #{tpu_custom_call.1} parent=1 // pred_region
      %vm43 = vcmask 7168
      %44 = vst.msk [vmem:[#allocation2] sm:$0xff] %vm43, 0.0
    $region25: #{tpu_custom_call.1} parent=1 // pred_fallthru
      _
    %v45 = vld [vmem:[#allocation3] sm:$0xff]
    %v46 = vld [vmem:[%s1] sm:$0x1]
    %v48 = vlaneseq
    %v49 = vshrl.u32 %v48, 7
    %v50 = vsub.s32 0, %v49
    %v51 = vrot.slane %v46, %v50
    %v53 = vmul.f32 %v45, %v51
    %v54 = vld [vmem:[#allocation2] sm:$0xff]
    %vm55 = vcmask 261120
    %v56 = vsel %vm55, %v53, 0.0
    %57 = vadd.xlane.f32.xlu0 %v56
    %v58 = vpop.xlane.xlu0 %57
    %v59 = vadd.f32 %v54, %v58
    %vm60 = vcmask 7168
    %61 = vst.msk [vmem:[#allocation2] sm:$0xff] %vm60, %v59
    // Predicated region
    $region26: #{tpu_custom_call.1} parent=1 // pred_check
      %p62 = pneg %p39
    $region27: #{tpu_custom_call.1} parent=1 // pred_check_branch
      %64 = sbr.rel (%p62) target = $region29
    $region28: #{tpu_custom_call.1} parent=1 // pred_region
      %s65 = sld [smem:[#allocation6]]
      %s66 = sld [smem:[#allocation6 + $0x1]]
      %s67 = sld [smem:[#allocation6 + $0x2]]
      %v68 = vld [vmem:[#allocation2] sm:$0xff]
      %v69 = vstv %s65
      %v70 = vadd.f32 %v68, %v69
      %v71 = vmax.f32 %v70, 0.0
      %v72 = vstv %s66
      %v73 = vmul.f32 %v71, %v72
      %v74 = vstv %s67
      %v75 = vadd.f32 %v73, %v74
      %v76 = vsub.f32 0.0, %v75
      %v77 = vmul.f32 %v76, 1.442695
      %v78 = vpow.pop %v77
      %v79 = vadd.f32 %v78, 1.0
      %v80 = vrcp.pop %v79
      %81 = vst.msk [vmem:[%s3] sm:$0xff] %vm60, %v80
    $region29: #{tpu_custom_call.1} parent=1 // pred_fallthru
      _
    // Predicated region
    $region30: #{tpu_custom_call.1} parent=1 // pred_check
      _
    $region31: #{tpu_custom_call.1} parent=1 // pred_check_branch
      %83 = sbr.rel (0) target = $region33
    $region32: #{tpu_custom_call.1} parent=1 // pred_region
      _
    $region33: #{tpu_custom_call.1} parent=1 // pred_fallthru
      _
    // Predicated region
    $region34: #{tpu_custom_call.1} parent=1 // pred_check
      _
    $region35: #{tpu_custom_call.1} parent=1 // pred_check_branch
      %85 = sbr.rel (0) target = $region37
    $region36: #{tpu_custom_call.1} parent=1 // pred_region
      _
    $region37: #{tpu_custom_call.1} parent=1 // pred_fallthru
      _
    %86 = vsyncpa [#allocation4], 1
    %87 = vsyncpa [#allocation5], 1

</llo_original>
